<compile_context>
chip_gen: v5e
topology: v5e:2x2
jax: 0.10.0
libtpu: 0.0.40
codegen_flags: <defaults>
</compile_context>

<pallas_src>
import functools

import jax
import jax.numpy as jnp
from jax.experimental import pallas as pl
from jax.experimental.pallas import tpu as pltpu

MAX_BLOCK_B = 4096   # far below scoped-VMEM limits on v5e/v6e/v7x at this footprint
ROW_ALIGN = 16       # bf16 native sublane tile (cheap insurance for the cast path)


def _round_up(x, m):
    return ((x + m - 1) // m) * m


def mlp_kernel(x_ref,
               w1_ref, b1_ref,
               w2_ref, b2_ref,
               w3_ref, b3_ref,
               w4_ref, b4_ref,
               w5_ref, b5_ref,
               o_ref):
    # Entire MLP hot path lives in VMEM: 5 MXU matmuls (bf16 operands, f32
    # accumulate) + VPU bias/ReLU in f32. x arrives as f32 and is cast to bf16
    # in-register (no extra HBM pass in the wrapper).
    cdt = w1_ref.dtype  # compute (operand) dtype, bf16

    h = jnp.dot(x_ref[...].astype(cdt), w1_ref[...],
                preferred_element_type=jnp.float32) + b1_ref[...]
    h = jnp.maximum(h, 0.0)

    h = jnp.dot(h.astype(cdt), w2_ref[...],
                preferred_element_type=jnp.float32) + b2_ref[...]
    h = jnp.maximum(h, 0.0)

    h = jnp.dot(h.astype(cdt), w3_ref[...],
                preferred_element_type=jnp.float32) + b3_ref[...]
    h = jnp.maximum(h, 0.0)

    h = jnp.dot(h.astype(cdt), w4_ref[...],
                preferred_element_type=jnp.float32) + b4_ref[...]
    # linear5: no activation (matches the torch forward).
    h = jnp.dot(h.astype(cdt), w5_ref[...],
                preferred_element_type=jnp.float32) + b5_ref[...]

    o_ref[...] = h.astype(o_ref.dtype)


def _choose_block_b(batch):
    # Small/medium batches: a single grid step covering everything (no per-step
    # overhead; "parallel" buys nothing on single-TC v5e/v6e anyway).
    b16 = _round_up(batch, ROW_ALIGN)
    if b16 <= MAX_BLOCK_B:
        return b16
    # Large batches: even number of equal 16-aligned blocks so v7x's two
    # TensorCores get balanced work; each block is still large enough that DMA
    # time dwarfs the ~0.35 us step overhead.
    n_blocks = _round_up(pl.cdiv(b16, MAX_BLOCK_B), 2)
    return _round_up(pl.cdiv(b16, n_blocks), ROW_ALIGN)


def pack_params(params, compute_dtype=jnp.bfloat16):
    # One-time packing: weights cast to bf16 (MXU operands), biases stay f32
    # (bias-add/ReLU run in f32 on the VPU). Do this at init, NOT per call.
    return tuple((w.astype(compute_dtype), b.astype(jnp.float32))
                 for (w, b) in params)


@functools.partial(jax.jit, static_argnames=("block_b",))
def mlp_forward(x, packed_params, block_b=None):
    (w1, b1), (w2, b2), (w3, b3), (w4, b4), (w5, b5) = packed_params
    B, in_dim = x.shape
    out_dim = w5.shape[1]

    if block_b is None:
        block_b = _choose_block_b(B)

    operands = (x, w1, b1, w2, b2, w3, b3, w4, b4, w5, b5)

    grid = (pl.cdiv(B, block_b),)

    def whole(i):  # weights/biases: same (only) block at every grid step
        return (0, 0)

    # x: last block dim == full array dim (legal), so no feature padding needed.
    in_specs = [pl.BlockSpec((block_b, in_dim), lambda i: (i, 0))]
    for arr in operands[1:]:
        in_specs.append(pl.BlockSpec(arr.shape, whole))

    # Narrow output (block last dim == full array dim): 4 B/row of HBM writes
    # instead of the previous 512 B/row (128-lane f32 padding).
    out_specs = pl.BlockSpec((block_b, out_dim), lambda i: (i, 0))

    # Advisory cost hint (memory-bound: x in, out out, weights once).
    flops = 2 * B * (in_dim * 64 + 64 * 32 + 32 * 32 + 32 * 16 + 16 * out_dim)
    bytes_accessed = (
        B * in_dim * 4
        + B * out_dim * 4
        + sum(int(a.size) * a.dtype.itemsize for a in operands[1:])
    )

    return pl.pallas_call(
        mlp_kernel,
        out_shape=jax.ShapeDtypeStruct((B, out_dim), jnp.float32),
        grid_spec=pltpu.PrefetchScalarGridSpec(
            num_scalar_prefetch=0,
            grid=grid,
            in_specs=in_specs,
            out_specs=out_specs,
        ),
        compiler_params=pltpu.CompilerParams(
            dimension_semantics=("parallel",)),
        cost_estimate=pl.CostEstimate(
            flops=int(flops),
            transcendentals=0,
            bytes_accessed=int(bytes_accessed)),
    )(*operands)


def init_linear(key, fan_in, fan_out):
    # PyTorch-default-style init: U(-1/sqrt(fan_in), 1/sqrt(fan_in)).
    # Weights stored transposed (in, out) so the kernel computes x @ W + b,
    # identical math to torch's x @ W.T + b.
    kw, kb = jax.random.split(key)
    bound = 1.0 / jnp.sqrt(jnp.float32(fan_in))
    w = jax.random.uniform(kw, (fan_in, fan_out), jnp.float32, -bound, bound)
    b = jax.random.uniform(kb, (1, fan_out), jnp.float32, -bound, bound)
    return w, b


def ref_forward(x, params, compute_dtype=jnp.bfloat16):
    # Pure-JAX reference mirroring the kernel's mixed precision exactly:
    # bf16 matmul operands, f32 accumulation, f32 bias/ReLU.
    h = x.astype(compute_dtype)
    n_layers = len(params)
    for idx, (w, b) in enumerate(params):
        h = jnp.dot(h, w.astype(compute_dtype),
                    preferred_element_type=jnp.float32) + b
        if idx < 3:                      # ReLU after linear1..3 only
            h = jnp.maximum(h, 0.0)
        if idx < n_layers - 1:
            h = h.astype(compute_dtype)
    return h


if __name__ == "__main__":
    # dacon ddarung: 9 input features after dropping 'count'; regression -> 1 output.
    input_dim, output_dim = 9, 1
    batch = 64  # small demo batch -> single grid step (block_b=64)

    key = jax.random.PRNGKey(0)
    k_x, k1, k2, k3, k4, k5 = jax.random.split(key, 6)

    x = jax.random.normal(k_x, (batch, input_dim), jnp.float32)

    params = (
        init_linear(k1, input_dim, 64),
        init_linear(k2, 64, 32),
        init_linear(k3, 32, 32),
        init_linear(k4, 32, 16),
        init_linear(k5, 16, output_dim),
    )

    packed = pack_params(params)  # one-time bf16 cast, outside the call path

    out = mlp_forward(x, packed)
    jax.block_until_ready(out)

    r = ref_forward(x, params)
    assert out.shape == (batch, output_dim)
    assert jnp.allclose(out, r, atol=2e-2, rtol=2e-2), (
        float(jnp.max(jnp.abs(out - r))))

    print("KERNEL_OK")
</pallas_src>

<mosaic_0001>
module attributes {stable_mosaic.version = 11 : i64} {
  func.func @mlp_kernel(%arg0: i32, %arg1: memref<64x9xf32, #tpu.memory_space<vmem>>, %arg2: memref<9x64xbf16, #tpu.memory_space<vmem>>, %arg3: memref<1x64xf32, #tpu.memory_space<vmem>>, %arg4: memref<64x32xbf16, #tpu.memory_space<vmem>>, %arg5: memref<1x32xf32, #tpu.memory_space<vmem>>, %arg6: memref<32x32xbf16, #tpu.memory_space<vmem>>, %arg7: memref<1x32xf32, #tpu.memory_space<vmem>>, %arg8: memref<32x16xbf16, #tpu.memory_space<vmem>>, %arg9: memref<1x16xf32, #tpu.memory_space<vmem>>, %arg10: memref<16x1xbf16, #tpu.memory_space<vmem>>, %arg11: memref<1x1xf32, #tpu.memory_space<vmem>>, %arg12: memref<64x1xf32, #tpu.memory_space<vmem>>) attributes {dimension_semantics = [#tpu.dimension_semantics<parallel>], iteration_bounds = array<i64: 1>, scalar_prefetch = 0 : i64, scratch_operands = 0 : i64, tpu.core_type = #tpu.core_type<tc>, window_params = [{transform_indices = @transform_0, window_bounds = array<i64: 64, 9>}, {pipeline_mode = #tpu.pipeline_mode<synchronous>, transform_indices = @transform_1, window_bounds = array<i64: 9, 64>}, {pipeline_mode = #tpu.pipeline_mode<synchronous>, transform_indices = @transform_2, window_bounds = array<i64: 1, 64>}, {pipeline_mode = #tpu.pipeline_mode<synchronous>, transform_indices = @transform_3, window_bounds = array<i64: 64, 32>}, {pipeline_mode = #tpu.pipeline_mode<synchronous>, transform_indices = @transform_4, window_bounds = array<i64: 1, 32>}, {pipeline_mode = #tpu.pipeline_mode<synchronous>, transform_indices = @transform_5, window_bounds = array<i64: 32, 32>}, {pipeline_mode = #tpu.pipeline_mode<synchronous>, transform_indices = @transform_6, window_bounds = array<i64: 1, 32>}, {pipeline_mode = #tpu.pipeline_mode<synchronous>, transform_indices = @transform_7, window_bounds = array<i64: 32, 16>}, {pipeline_mode = #tpu.pipeline_mode<synchronous>, transform_indices = @transform_8, window_bounds = array<i64: 1, 16>}, {pipeline_mode = #tpu.pipeline_mode<synchronous>, transform_indices = @transform_9, window_bounds = array<i64: 16, 1>}, {pipeline_mode = #tpu.pipeline_mode<synchronous>, transform_indices = @transform_10, window_bounds = array<i64: 1, 1>}, {transform_indices = @transform_11, window_bounds = array<i64: 64, 1>}]} {
    %c0 = arith.constant 0 : index
    %c0_0 = arith.constant 0 : index
    %0 = vector.load %arg1[%c0, %c0_0] : memref<64x9xf32, #tpu.memory_space<vmem>>, vector<64x9xf32>
    %1 = arith.truncf %0 : vector<64x9xf32> to vector<64x9xbf16>
    %c0_1 = arith.constant 0 : index
    %c0_2 = arith.constant 0 : index
    %2 = vector.load %arg2[%c0_1, %c0_2] : memref<9x64xbf16, #tpu.memory_space<vmem>>, vector<9x64xbf16>
    %cst = arith.constant dense<0.000000e+00> : vector<64x64xf32>
    %3 = tpu.matmul %1, %2, %cst {dimension_numbers = #tpu.dot_dimension_numbers<[1], [0], [0], [1], [0, 0, 1, 1], [], []>} : vector<64x9xbf16>, vector<9x64xbf16>, vector<64x64xf32> -> vector<64x64xf32>
    %c0_3 = arith.constant 0 : index
    %c0_4 = arith.constant 0 : index
    %4 = vector.load %arg3[%c0_3, %c0_4] : memref<1x64xf32, #tpu.memory_space<vmem>>, vector<1x64xf32>
    %5 = vector.broadcast %4 : vector<1x64xf32> to vector<64x64xf32>
    %6 = arith.addf %3, %5 : vector<64x64xf32>
    %cst_5 = arith.constant 0.000000e+00 : f32
    %7 = vector.broadcast %cst_5 : f32 to vector<64x64xf32>
    %8 = arith.maximumf %6, %7 : vector<64x64xf32>
    %9 = arith.truncf %8 : vector<64x64xf32> to vector<64x64xbf16>
    %c0_6 = arith.constant 0 : index
    %c0_7 = arith.constant 0 : index
    %10 = vector.load %arg4[%c0_6, %c0_7] : memref<64x32xbf16, #tpu.memory_space<vmem>>, vector<64x32xbf16>
    %cst_8 = arith.constant dense<0.000000e+00> : vector<64x32xf32>
    %11 = tpu.matmul %9, %10, %cst_8 {dimension_numbers = #tpu.dot_dimension_numbers<[1], [0], [0], [1], [0, 0, 1, 1], [], []>} : vector<64x64xbf16>, vector<64x32xbf16>, vector<64x32xf32> -> vector<64x32xf32>
    %c0_9 = arith.constant 0 : index
    %c0_10 = arith.constant 0 : index
    %12 = vector.load %arg5[%c0_9, %c0_10] : memref<1x32xf32, #tpu.memory_space<vmem>>, vector<1x32xf32>
    %13 = vector.broadcast %12 : vector<1x32xf32> to vector<64x32xf32>
    %14 = arith.addf %11, %13 : vector<64x32xf32>
    %cst_11 = arith.constant 0.000000e+00 : f32
    %15 = vector.broadcast %cst_11 : f32 to vector<64x32xf32>
    %16 = arith.maximumf %14, %15 : vector<64x32xf32>
    %17 = arith.truncf %16 : vector<64x32xf32> to vector<64x32xbf16>
    %c0_12 = arith.constant 0 : index
    %c0_13 = arith.constant 0 : index
    %18 = vector.load %arg6[%c0_12, %c0_13] : memref<32x32xbf16, #tpu.memory_space<vmem>>, vector<32x32xbf16>
    %cst_14 = arith.constant dense<0.000000e+00> : vector<64x32xf32>
    %19 = tpu.matmul %17, %18, %cst_14 {dimension_numbers = #tpu.dot_dimension_numbers<[1], [0], [0], [1], [0, 0, 1, 1], [], []>} : vector<64x32xbf16>, vector<32x32xbf16>, vector<64x32xf32> -> vector<64x32xf32>
    %c0_15 = arith.constant 0 : index
    %c0_16 = arith.constant 0 : index
    %20 = vector.load %arg7[%c0_15, %c0_16] : memref<1x32xf32, #tpu.memory_space<vmem>>, vector<1x32xf32>
    %21 = vector.broadcast %20 : vector<1x32xf32> to vector<64x32xf32>
    %22 = arith.addf %19, %21 : vector<64x32xf32>
    %cst_17 = arith.constant 0.000000e+00 : f32
    %23 = vector.broadcast %cst_17 : f32 to vector<64x32xf32>
    %24 = arith.maximumf %22, %23 : vector<64x32xf32>
    %25 = arith.truncf %24 : vector<64x32xf32> to vector<64x32xbf16>
    %c0_18 = arith.constant 0 : index
    %c0_19 = arith.constant 0 : index
    %26 = vector.load %arg8[%c0_18, %c0_19] : memref<32x16xbf16, #tpu.memory_space<vmem>>, vector<32x16xbf16>
    %cst_20 = arith.constant dense<0.000000e+00> : vector<64x16xf32>
    %27 = tpu.matmul %25, %26, %cst_20 {dimension_numbers = #tpu.dot_dimension_numbers<[1], [0], [0], [1], [0, 0, 1, 1], [], []>} : vector<64x32xbf16>, vector<32x16xbf16>, vector<64x16xf32> -> vector<64x16xf32>
    %c0_21 = arith.constant 0 : index
    %c0_22 = arith.constant 0 : index
    %28 = vector.load %arg9[%c0_21, %c0_22] : memref<1x16xf32, #tpu.memory_space<vmem>>, vector<1x16xf32>
    %29 = vector.broadcast %28 : vector<1x16xf32> to vector<64x16xf32>
    %30 = arith.addf %27, %29 : vector<64x16xf32>
    %31 = arith.truncf %30 : vector<64x16xf32> to vector<64x16xbf16>
    %c0_23 = arith.constant 0 : index
    %c0_24 = arith.constant 0 : index
    %32 = vector.load %arg10[%c0_23, %c0_24] : memref<16x1xbf16, #tpu.memory_space<vmem>>, vector<16x1xbf16>
    %cst_25 = arith.constant dense<0.000000e+00> : vector<64x1xf32>
    %33 = tpu.matmul %31, %32, %cst_25 {dimension_numbers = #tpu.dot_dimension_numbers<[1], [0], [0], [1], [0, 0, 1, 1], [], []>} : vector<64x16xbf16>, vector<16x1xbf16>, vector<64x1xf32> -> vector<64x1xf32>
    %c0_26 = arith.constant 0 : index
    %c0_27 = arith.constant 0 : index
    %34 = vector.load %arg11[%c0_26, %c0_27] : memref<1x1xf32, #tpu.memory_space<vmem>>, vector<1x1xf32>
    %35 = vector.broadcast %34 : vector<1x1xf32> to vector<64x1xf32>
    %36 = arith.addf %33, %35 : vector<64x1xf32>
    %c0_28 = arith.constant 0 : index
    %c0_29 = arith.constant 0 : index
    %37 = vector.load %arg12[%c0_28, %c0_29] : memref<64x1xf32, #tpu.memory_space<vmem>>, vector<64x1xf32>
    tpu.vector_store %arg12[%c0_28, %c0_29], %36 {strides = array<i32>} : memref<64x1xf32, #tpu.memory_space<vmem>>, vector<64x1xf32>,
    return
  }
  func.func @transform_0(%arg0: i32) -> (i32, i32) {
    %c0_i32 = arith.constant 0 : i32
    %c0_i32_0 = arith.constant 0 : i32
    return %arg0, %c0_i32 : i32, i32
  }
  func.func @transform_1(%arg0: i32) -> (i32, i32) {
    %c0_i32 = arith.constant 0 : i32
    %c0_i32_0 = arith.constant 0 : i32
    %c0_i32_1 = arith.constant 0 : i32
    return %c0_i32, %c0_i32_0 : i32, i32
  }
  func.func @transform_2(%arg0: i32) -> (i32, i32) {
    %c0_i32 = arith.constant 0 : i32
    %c0_i32_0 = arith.constant 0 : i32
    %c0_i32_1 = arith.constant 0 : i32
    return %c0_i32, %c0_i32_0 : i32, i32
  }
  func.func @transform_3(%arg0: i32) -> (i32, i32) {
    %c0_i32 = arith.constant 0 : i32
    %c0_i32_0 = arith.constant 0 : i32
    %c0_i32_1 = arith.constant 0 : i32
    return %c0_i32, %c0_i32_0 : i32, i32
  }
  func.func @transform_4(%arg0: i32) -> (i32, i32) {
    %c0_i32 = arith.constant 0 : i32
    %c0_i32_0 = arith.constant 0 : i32
    %c0_i32_1 = arith.constant 0 : i32
    return %c0_i32, %c0_i32_0 : i32, i32
  }
  func.func @transform_5(%arg0: i32) -> (i32, i32) {
    %c0_i32 = arith.constant 0 : i32
    %c0_i32_0 = arith.constant 0 : i32
    %c0_i32_1 = arith.constant 0 : i32
    return %c0_i32, %c0_i32_0 : i32, i32
  }
  func.func @transform_6(%arg0: i32) -> (i32, i32) {
    %c0_i32 = arith.constant 0 : i32
    %c0_i32_0 = arith.constant 0 : i32
    %c0_i32_1 = arith.constant 0 : i32
    return %c0_i32, %c0_i32_0 : i32, i32
  }
  func.func @transform_7(%arg0: i32) -> (i32, i32) {
    %c0_i32 = arith.constant 0 : i32
    %c0_i32_0 = arith.constant 0 : i32
    %c0_i32_1 = arith.constant 0 : i32
    return %c0_i32, %c0_i32_0 : i32, i32
  }
  func.func @transform_8(%arg0: i32) -> (i32, i32) {
    %c0_i32 = arith.constant 0 : i32
    %c0_i32_0 = arith.constant 0 : i32
    %c0_i32_1 = arith.constant 0 : i32
    return %c0_i32, %c0_i32_0 : i32, i32
  }
  func.func @transform_9(%arg0: i32) -> (i32, i32) {
    %c0_i32 = arith.constant 0 : i32
    %c0_i32_0 = arith.constant 0 : i32
    %c0_i32_1 = arith.constant 0 : i32
    return %c0_i32, %c0_i32_0 : i32, i32
  }
  func.func @transform_10(%arg0: i32) -> (i32, i32) {
    %c0_i32 = arith.constant 0 : i32
    %c0_i32_0 = arith.constant 0 : i32
    %c0_i32_1 = arith.constant 0 : i32
    return %c0_i32, %c0_i32_0 : i32, i32
  }
  func.func @transform_11(%arg0: i32) -> (i32, i32) {
    %c0_i32 = arith.constant 0 : i32
    %c0_i32_0 = arith.constant 0 : i32
    return %arg0, %c0_i32 : i32, i32
  }
}

</mosaic_0001>

<llo_original>
// kernel: mlp_forward.1
$region0: #{mlp_forward.1}
  #allocation0 [shape = 'u32[]', space=smem, size = 0x4, offset = 0x4, fixed_abs, tag = 'smem constant byte address 0x4 - core index']
  #allocation1 [shape = 'u32[72,128]{1,0:T(1,128)}', space=vmem, size = 0x9000, scoped, tag = 'internal scratch']
  #allocation2 [shape = 'f32[1,1]{1,0:T(1,128)S(1)}', space=vmem, size = 0x200, scoped, tag = 'scoped memory for mlp_forward.1']
  %s0 = inlined_call_operand.vmem [shape: f32[64,9], index: 0, kind: input, shape index: {}]
  %s1 = inlined_call_operand.vmem [shape: bf16[9,64], index: 1, kind: input, shape index: {}]
  %s2 = inlined_call_operand.vmem [shape: f32[1,64], index: 2, kind: input, shape index: {}]
  %s3 = inlined_call_operand.vmem [shape: bf16[64,32], index: 3, kind: input, shape index: {}]
  %s4 = inlined_call_operand.vmem [shape: f32[1,32], index: 4, kind: input, shape index: {}]
  %s5 = inlined_call_operand.vmem [shape: bf16[32,32], index: 5, kind: input, shape index: {}]
  %s6 = inlined_call_operand.vmem [shape: f32[1,32], index: 6, kind: input, shape index: {}]
  %s7 = inlined_call_operand.vmem [shape: bf16[32,16], index: 7, kind: input, shape index: {}]
  %s8 = inlined_call_operand.vmem [shape: f32[1,16], index: 8, kind: input, shape index: {}]
  %s9 = inlined_call_operand.vmem [shape: bf16[16,1], index: 9, kind: input, shape index: {}]
  %s10 = inlined_call_operand.<no memory space> [shape: f32[1,1], index: 10, kind: input, shape index: {}]
  %s11 = inlined_call_operand.vmem [shape: f32[64,1], index: 11, kind: output, shape index: {}]
  %s12 = sld [smem:[#allocation0]]
  $region54: #{mlp_forward.1} parent=0
    _
  %s14 = ssub.s32 1, %s12
  %s15 = scalar_select 0, %s14, %s12
  %v16 = vstv %s10
  %17 = vst [vmem:[#allocation2] sm:$0x1] %v16
  // Predicated region
  $region2: #{mlp_forward.1} parent=0 // pred_check
    _
  $region3: #{mlp_forward.1} parent=0 // pred_check_branch
    %19 = sbr.rel (0) target = $region5
  $region4: #{mlp_forward.1} parent=0 // pred_region
    _
  $region5: #{mlp_forward.1} parent=0 // pred_fallthru
    _
  // Predicated region
  $region6: #{mlp_forward.1} parent=0 // pred_check
    _
  $region7: #{mlp_forward.1} parent=0 // pred_check_branch
    %21 = sbr.rel (0) target = $region9
  $region8: #{mlp_forward.1} parent=0 // pred_region
    _
  $region9: #{mlp_forward.1} parent=0 // pred_fallthru
    _
  // Predicated region
  $region10: #{mlp_forward.1} parent=0 // pred_check
    _
  $region11: #{mlp_forward.1} parent=0 // pred_check_branch
    %23 = sbr.rel (0) target = $region13
  $region12: #{mlp_forward.1} parent=0 // pred_region
    _
  $region13: #{mlp_forward.1} parent=0 // pred_fallthru
    _
  // Predicated region
  $region14: #{mlp_forward.1} parent=0 // pred_check
    _
  $region15: #{mlp_forward.1} parent=0 // pred_check_branch
    %25 = sbr.rel (0) target = $region17
  $region16: #{mlp_forward.1} parent=0 // pred_region
    _
  $region17: #{mlp_forward.1} parent=0 // pred_fallthru
    _
  // Predicated region
  $region18: #{mlp_forward.1} parent=0 // pred_check
    _
  $region19: #{mlp_forward.1} parent=0 // pred_check_branch
    %27 = sbr.rel (0) target = $region21
  $region20: #{mlp_forward.1} parent=0 // pred_region
    _
  $region21: #{mlp_forward.1} parent=0 // pred_fallthru
    _
  // Predicated region
  $region22: #{mlp_forward.1} parent=0 // pred_check
    _
  $region23: #{mlp_forward.1} parent=0 // pred_check_branch
    %29 = sbr.rel (0) target = $region25
  $region24: #{mlp_forward.1} parent=0 // pred_region
    _
  $region25: #{mlp_forward.1} parent=0 // pred_fallthru
    _
  // Predicated region
  $region26: #{mlp_forward.1} parent=0 // pred_check
    _
  $region27: #{mlp_forward.1} parent=0 // pred_check_branch
    %31 = sbr.rel (0) target = $region29
  $region28: #{mlp_forward.1} parent=0 // pred_region
    _
  $region29: #{mlp_forward.1} parent=0 // pred_fallthru
    _
  // Predicated region
  $region30: #{mlp_forward.1} parent=0 // pred_check
    _
  $region31: #{mlp_forward.1} parent=0 // pred_check_branch
    %33 = sbr.rel (0) target = $region33
  $region32: #{mlp_forward.1} parent=0 // pred_region
    _
  $region33: #{mlp_forward.1} parent=0 // pred_fallthru
    _
  // Predicated region
  $region34: #{mlp_forward.1} parent=0 // pred_check
    _
  $region35: #{mlp_forward.1} parent=0 // pred_check_branch
    %35 = sbr.rel (0) target = $region37
  $region36: #{mlp_forward.1} parent=0 // pred_region
    _
  $region37: #{mlp_forward.1} parent=0 // pred_fallthru
    _
  // Predicated region
  $region38: #{mlp_forward.1} parent=0 // pred_check
    _
  $region39: #{mlp_forward.1} parent=0 // pred_check_branch
    %37 = sbr.rel (0) target = $region41
  $region40: #{mlp_forward.1} parent=0 // pred_region
    _
  $region41: #{mlp_forward.1} parent=0 // pred_fallthru
    _
  // Predicated region
  $region42: #{mlp_forward.1} parent=0 // pred_check
    _
  $region43: #{mlp_forward.1} parent=0 // pred_check_branch
    %39 = sbr.rel (0) target = $region45
  $region44: #{mlp_forward.1} parent=0 // pred_region
    _
  $region45: #{mlp_forward.1} parent=0 // pred_fallthru
    _
  %v41 = vld [vmem:[%s0] sm:$0xff]
  %v42 = vld [vmem:[%s0 + $0x8] sm:$0xff]
  %v43 = vld [vmem:[%s0 + $0x10] sm:$0xff]
  %v44 = vld [vmem:[%s0 + $0x18] sm:$0xff]
  %v45 = vld [vmem:[%s0 + $0x20] sm:$0xff]
  %v46 = vld [vmem:[%s0 + $0x28] sm:$0xff]
  %v47 = vld [vmem:[%s0 + $0x30] sm:$0xff]
  %v48 = vld [vmem:[%s0 + $0x38] sm:$0xff]
  %v49 = vpack.c.bf16 %v42, %v41
  %v50 = vpack.c.bf16 %v44, %v43
  %v51 = vpack.c.bf16 %v46, %v45
  %v52 = vpack.c.bf16 %v48, %v47
  %v53 = vld [vmem:[%s1] sm:$0xf]
  %v54 = vld [vmem:[%s1 + $0x4] sm:$0x1]
  %v55 = vld [vmem:[%s2] sm:$0x1]
  %v57 = vperm.slane %v55, 0
  %v61 = vunpack.c.l.b16 %v53
  %v62 = vunpack.c.l.b16 %v54
  %v63 = vpack.c.b16 %v62, %v61
  %vm64 = vcmask 72704
  %v66 = vsel %vm64, %v49, 0
  %v69 = vsel %vm64, %v50, 0
  %v72 = vsel %vm64, %v51, 0
  %v75 = vsel %vm64, %v52, 0
  %vm77 = vcmask 1043456
  %vm78 = vcmask 1044480
  %v79 = vsel %vm77, 4294967295, 65535
  %v80 = vsel %vm78, %v79, 0
  %v82 = vand.u32 %v63, %v80
  %84 = vmatpush.bf16.msra.mxu0 0
  %85 = vmatpush.bf16.msra.mxu0 0
  %86 = vmatpush.bf16.msra.mxu0 0
  %87 = vmatpush.bf16.msra.mxu0 0
  %88 = vmatpush.bf16.msra.mxu0 0
  %89 = vmatpush.bf16.msra.mxu0 0
  %90 = vmatpush.bf16.msra.mxu0 0
  %91 = vmatpush.bf16.msra.mxu0 %v82
  %92 = vmatmul.bf16.gmra.mxu0 %v66
  %v93 = vpop.f32.mrf.mxu0
  %v94 = vadd.f32 %v57, %v93
  %v95 = vpop.f32.mrf.mxu0
  %v96 = vadd.f32 %v57, %v95
  %97 = vmatmul.bf16.gmra.mxu0 %v69
  %v98 = vpop.f32.mrf.mxu0
  %v99 = vadd.f32 %v57, %v98
  %v100 = vpop.f32.mrf.mxu0
  %v101 = vadd.f32 %v57, %v100
  %102 = vmatmul.bf16.gmra.mxu0 %v72
  %v103 = vpop.f32.mrf.mxu0
  %v104 = vadd.f32 %v57, %v103
  %v105 = vpop.f32.mrf.mxu0
  %v106 = vadd.f32 %v57, %v105
  %107 = vmatmul.bf16.gmra.mxu0 %v75
  %v108 = vpop.f32.mrf.mxu0
  %v109 = vadd.f32 %v57, %v108
  %v110 = vpop.f32.mrf.mxu0
  %v111 = vadd.f32 %v57, %v110
  %112 = vdwg.mxu0
  %v113 = vmax.f32 %v94, 0.0
  %v114 = vmax.f32 %v96, 0.0
  %v115 = vmax.f32 %v99, 0.0
  %v116 = vmax.f32 %v101, 0.0
  %v117 = vmax.f32 %v104, 0.0
  %v118 = vmax.f32 %v106, 0.0
  %v119 = vmax.f32 %v109, 0.0
  %v120 = vmax.f32 %v111, 0.0
  %v121 = vpack.c.bf16 %v114, %v113
  %v122 = vpack.c.bf16 %v116, %v115
  %v123 = vpack.c.bf16 %v118, %v117
  %v124 = vpack.c.bf16 %v120, %v119
  %v125 = vld [vmem:[%s3] sm:$0xf]
  %v126 = vld [vmem:[%s3 + $0x4] sm:$0xf]
  %v127 = vld [vmem:[%s3 + $0x8] sm:$0xf]
  %v128 = vld [vmem:[%s3 + $0xc] sm:$0xf]
  %v129 = vld [vmem:[%s3 + $0x10] sm:$0xf]
  %v130 = vld [vmem:[%s3 + $0x14] sm:$0xf]
  %v131 = vld [vmem:[%s3 + $0x18] sm:$0xf]
  %v132 = vld [vmem:[%s3 + $0x1c] sm:$0xf]
  %v133 = vld [vmem:[%s4] sm:$0x1]
  %v135 = vperm.slane %v133, 0
  %v145 = vunpack.c.l.b16 %v125
  %v146 = vunpack.c.l.b16 %v126
  %v147 = vunpack.c.l.b16 %v127
  %v148 = vunpack.c.l.b16 %v128
  %v149 = vunpack.c.l.b16 %v129
  %v150 = vunpack.c.l.b16 %v130
  %v151 = vunpack.c.l.b16 %v131
  %v152 = vunpack.c.l.b16 %v132
  %v153 = vpack.c.b16 %v146, %v145
  %v154 = vpack.c.b16 %v148, %v147
  %v155 = vpack.c.b16 %v150, %v149
  %v156 = vpack.c.b16 %v152, %v151
  %vm161 = vcmask 523264
  %v163 = vsel %vm161, %v121, 0
  %v166 = vsel %vm161, %v122, 0
  %v169 = vsel %vm161, %v123, 0
  %v172 = vsel %vm161, %v124, 0
  %174 = vmatpush.bf16.msra.mxu0 0
  %175 = vmatpush.bf16.msra.mxu0 0
  %176 = vmatpush.bf16.msra.mxu0 0
  %177 = vmatpush.bf16.msra.mxu0 0
  %178 = vmatpush.bf16.msra.mxu0 %v156
  %179 = vmatpush.bf16.msra.mxu0 %v155
  %180 = vmatpush.bf16.msra.mxu0 %v154
  %181 = vmatpush.bf16.msra.mxu0 %v153
  %182 = vmatmul.bf16.gmra.mxu0 %v163
  %v183 = vpop.f32.mrf.mxu0
  %v184 = vadd.f32 %v135, %v183
  %v185 = vpop.f32.mrf.mxu0
  %v186 = vadd.f32 %v135, %v185
  %187 = vmatmul.bf16.gmra.mxu0 %v166
  %v188 = vpop.f32.mrf.mxu0
  %v189 = vadd.f32 %v135, %v188
  %v190 = vpop.f32.mrf.mxu0
  %v191 = vadd.f32 %v135, %v190
  %192 = vmatmul.bf16.gmra.mxu0 %v169
  %v193 = vpop.f32.mrf.mxu0
  %v194 = vadd.f32 %v135, %v193
  %v195 = vpop.f32.mrf.mxu0
  %v196 = vadd.f32 %v135, %v195
  %197 = vmatmul.bf16.gmra.mxu0 %v172
  %v198 = vpop.f32.mrf.mxu0
  %v199 = vadd.f32 %v135, %v198
  %v200 = vpop.f32.mrf.mxu0
  %v201 = vadd.f32 %v135, %v200
  %202 = vdwg.mxu0
  %v203 = vmax.f32 %v184, 0.0
  %v204 = vmax.f32 %v186, 0.0
  %v205 = vmax.f32 %v189, 0.0
  %v206 = vmax.f32 %v191, 0.0
  %v207 = vmax.f32 %v194, 0.0
  %v208 = vmax.f32 %v196, 0.0
  %v209 = vmax.f32 %v199, 0.0
  %v210 = vmax.f32 %v201, 0.0
  %v211 = vpack.c.bf16 %v204, %v203
  %v212 = vpack.c.bf16 %v206, %v205
  %v213 = vpack.c.bf16 %v208, %v207
  %v214 = vpack.c.bf16 %v210, %v209
  %v215 = vld [vmem:[%s5] sm:$0xf]
  %v216 = vld [vmem:[%s5 + $0x4] sm:$0xf]
  %v217 = vld [vmem:[%s5 + $0x8] sm:$0xf]
  %v218 = vld [vmem:[%s5 + $0xc] sm:$0xf]
  %v219 = vld [vmem:[%s6] sm:$0x1]
  %v221 = vperm.slane %v219, 0
  %v227 = vunpack.c.l.b16 %v215
  %v228 = vunpack.c.l.b16 %v216
  %v229 = vunpack.c.l.b16 %v217
  %v230 = vunpack.c.l.b16 %v218
  %v231 = vpack.c.b16 %v228, %v227
  %v232 = vpack.c.b16 %v230, %v229
  %vm235 = vcmask 261120
  %v237 = vsel %vm235, %v211, 0
  %v240 = vsel %vm235, %v212, 0
  %v243 = vsel %vm235, %v213, 0
  %v246 = vsel %vm235, %v214, 0
  %248 = vmatpush.bf16.msra.mxu0 0
  %249 = vmatpush.bf16.msra.mxu0 0
  %250 = vmatpush.bf16.msra.mxu0 0
  %251 = vmatpush.bf16.msra.mxu0 0
  %252 = vmatpush.bf16.msra.mxu0 0
  %253 = vmatpush.bf16.msra.mxu0 0
  %254 = vmatpush.bf16.msra.mxu0 %v232
  %255 = vmatpush.bf16.msra.mxu0 %v231
  %256 = vmatmul.bf16.gmra.mxu0 %v237
  %v257 = vpop.f32.mrf.mxu0
  %v258 = vadd.f32 %v221, %v257
  %v259 = vpop.f32.mrf.mxu0
  %v260 = vadd.f32 %v221, %v259
  %261 = vmatmul.bf16.gmra.mxu0 %v240
  %v262 = vpop.f32.mrf.mxu0
  %v263 = vadd.f32 %v221, %v262
  %v264 = vpop.f32.mrf.mxu0
  %v265 = vadd.f32 %v221, %v264
  %266 = vmatmul.bf16.gmra.mxu0 %v243
  %v267 = vpop.f32.mrf.mxu0
  %v268 = vadd.f32 %v221, %v267
  %v269 = vpop.f32.mrf.mxu0
  %v270 = vadd.f32 %v221, %v269
  %271 = vmatmul.bf16.gmra.mxu0 %v246
  %v272 = vpop.f32.mrf.mxu0
  %v273 = vadd.f32 %v221, %v272
  %v274 = vpop.f32.mrf.mxu0
  %v275 = vadd.f32 %v221, %v274
  %276 = vdwg.mxu0
  %v277 = vmax.f32 %v258, 0.0
  %v278 = vmax.f32 %v260, 0.0
  %v279 = vmax.f32 %v263, 0.0
  %v280 = vmax.f32 %v265, 0.0
  %v281 = vmax.f32 %v268, 0.0
  %v282 = vmax.f32 %v270, 0.0
  %v283 = vmax.f32 %v273, 0.0
  %v284 = vmax.f32 %v275, 0.0
  %v285 = vpack.c.bf16 %v278, %v277
  %v286 = vpack.c.bf16 %v280, %v279
  %v287 = vpack.c.bf16 %v282, %v281
  %v288 = vpack.c.bf16 %v284, %v283
  %v289 = vld [vmem:[%s7] sm:$0xf]
  %v290 = vld [vmem:[%s7 + $0x4] sm:$0xf]
  %v291 = vld [vmem:[%s7 + $0x8] sm:$0xf]
  %v292 = vld [vmem:[%s7 + $0xc] sm:$0xf]
  %v293 = vld [vmem:[%s8] sm:$0x1]
  %v295 = vperm.slane %v293, 0
  %v301 = vunpack.c.l.b16 %v289
  %v302 = vunpack.c.l.b16 %v290
  %v303 = vunpack.c.l.b16 %v291
  %v304 = vunpack.c.l.b16 %v292
  %v305 = vpack.c.b16 %v302, %v301
  %v306 = vpack.c.b16 %v304, %v303
  %v310 = vsel %vm235, %v285, 0
  %v313 = vsel %vm235, %v286, 0
  %v316 = vsel %vm235, %v287, 0
  %v319 = vsel %vm235, %v288, 0
  %321 = vmatpush.bf16.msra.mxu0 0
  %322 = vmatpush.bf16.msra.mxu0 0
  %323 = vmatpush.bf16.msra.mxu0 0
  %324 = vmatpush.bf16.msra.mxu0 0
  %325 = vmatpush.bf16.msra.mxu0 0
  %326 = vmatpush.bf16.msra.mxu0 0
  %327 = vmatpush.bf16.msra.mxu0 %v306
  %328 = vmatpush.bf16.msra.mxu0 %v305
  %329 = vmatmul.bf16.gmra.mxu0 %v310
  %v330 = vpop.f32.mrf.mxu0
  %v331 = vadd.f32 %v295, %v330
  %v332 = vpop.f32.mrf.mxu0
  %v333 = vadd.f32 %v295, %v332
  %334 = vmatmul.bf16.gmra.mxu0 %v313
  %v335 = vpop.f32.mrf.mxu0
  %v336 = vadd.f32 %v295, %v335
  %v337 = vpop.f32.mrf.mxu0
  %v338 = vadd.f32 %v295, %v337
  %339 = vmatmul.bf16.gmra.mxu0 %v316
  %v340 = vpop.f32.mrf.mxu0
  %v341 = vadd.f32 %v295, %v340
  %v342 = vpop.f32.mrf.mxu0
  %v343 = vadd.f32 %v295, %v342
  %344 = vmatmul.bf16.gmra.mxu0 %v319
  %v345 = vpop.f32.mrf.mxu0
  %v346 = vadd.f32 %v295, %v345
  %v347 = vpop.f32.mrf.mxu0
  %v348 = vadd.f32 %v295, %v347
  %349 = vdwg.mxu0
  %v350 = vpack.c.bf16 %v333, %v331
  %v351 = vpack.c.bf16 %v338, %v336
  %v352 = vpack.c.bf16 %v343, %v341
  %v353 = vpack.c.bf16 %v348, %v346
  %v354 = vld [vmem:[%s9] sm:$0xf]
  %v355 = vld [vmem:[%s9 + $0x4] sm:$0xf]
  %v356 = vld [vmem:[#allocation2] sm:$0x1]
  %v358 = vperm.slane %v356, 0
  %v362 = vunpack.c.l.b16 %v354
  %v363 = vunpack.c.l.b16 %v355
  %v364 = vpack.c.b16 %v363, %v362
  %vm366 = vcmask 130048
  %v368 = vsel %vm366, %v350, 0
  %v371 = vsel %vm366, %v351, 0
  %v374 = vsel %vm366, %v352, 0
  %v377 = vsel %vm366, %v353, 0
  %379 = vmatpush.bf16.msra.mxu0 0
  %380 = vmatpush.bf16.msra.mxu0 0
  %381 = vmatpush.bf16.msra.mxu0 0
  %382 = vmatpush.bf16.msra.mxu0 0
  %383 = vmatpush.bf16.msra.mxu0 0
  %384 = vmatpush.bf16.msra.mxu0 0
  %385 = vmatpush.bf16.msra.mxu0 0
  %386 = vmatpush.bf16.msra.mxu0 %v364
  %387 = vmatmul.bf16.gmra.mxu0 %v368
  %v388 = vpop.f32.mrf.mxu0
  %v389 = vadd.f32 %v358, %v388
  %v390 = vpop.f32.mrf.mxu0
  %v391 = vadd.f32 %v358, %v390
  %392 = vmatmul.bf16.gmra.mxu0 %v371
  %v393 = vpop.f32.mrf.mxu0
  %v394 = vadd.f32 %v358, %v393
  %v395 = vpop.f32.mrf.mxu0
  %v396 = vadd.f32 %v358, %v395
  %397 = vmatmul.bf16.gmra.mxu0 %v374
  %v398 = vpop.f32.mrf.mxu0
  %v399 = vadd.f32 %v358, %v398
  %v400 = vpop.f32.mrf.mxu0
  %v401 = vadd.f32 %v358, %v400
  %402 = vmatmul.bf16.gmra.mxu0 %v377
  %v403 = vpop.f32.mrf.mxu0
  %v404 = vadd.f32 %v358, %v403
  %v405 = vpop.f32.mrf.mxu0
  %v406 = vadd.f32 %v358, %v405
  %407 = vdwg.mxu0
  %vm408 = vcmask 7168
  %409 = vst.msk [vmem:[%s11] sm:$0xff] %vm408, %v389
  %410 = vst.msk [vmem:[%s11 + $0x8] sm:$0xff] %vm408, %v391
  %411 = vst.msk [vmem:[%s11 + $0x10] sm:$0xff] %vm408, %v394
  %412 = vst.msk [vmem:[%s11 + $0x18] sm:$0xff] %vm408, %v396
  %413 = vst.msk [vmem:[%s11 + $0x20] sm:$0xff] %vm408, %v399
  %414 = vst.msk [vmem:[%s11 + $0x28] sm:$0xff] %vm408, %v401
  %415 = vst.msk [vmem:[%s11 + $0x30] sm:$0xff] %vm408, %v404
  %416 = vst.msk [vmem:[%s11 + $0x38] sm:$0xff] %vm408, %v406
  // Predicated region
  $region46: #{mlp_forward.1} parent=0 // pred_check
    _
  $region47: #{mlp_forward.1} parent=0 // pred_check_branch
    %418 = sbr.rel (0) target = $region49
  $region48: #{mlp_forward.1} parent=0 // pred_region
    _
  $region49: #{mlp_forward.1} parent=0 // pred_fallthru
    _
  // Predicated region
  $region50: #{mlp_forward.1} parent=0 // pred_check
    _
  $region51: #{mlp_forward.1} parent=0 // pred_check_branch
    %420 = sbr.rel (0) target = $region53
  $region52: #{mlp_forward.1} parent=0 // pred_region
    _
  $region53: #{mlp_forward.1} parent=0 // pred_fallthru
    _

</llo_original>
